<compile_context>
chip_gen: v7x
topology: tpu7x:2x2x1
jax: 0.10.0
libtpu: 0.0.40
codegen_flags: <defaults>
</compile_context>

<pallas_src>
import functools

import jax
import jax.numpy as jnp
from jax import lax
from jax.experimental import pallas as pl
from jax.experimental.pallas import tpu as pltpu

KH = KW = 3
LANE = 128          # lane-width multiple for every matmul / output N dimension
SUB_BF16 = 16       # bf16 sublane tile -> channel-padding granularity


def _round_up(x, m):
    return (x + m - 1) // m * m


def _down_step_kernel(x_ref, w1_ref, b1_ref, w2_ref, b2_ref, o_ref, mid_ref, *,
                      W, W1, W2):
    # x_ref  : (Cin_p, Wxp)      bf16, x[c, b*H*W + i*W + j] = image[b, c, i, j], zero pad
    # w1_ref : (C1_p, 9*Cin_p)   bf16, folded conv1 weights (tap-major, channel-minor K)
    # b1_ref : (C1_p, 1)         f32
    # w2_ref : (C2, 9*C1_p)      bf16, folded conv2 weights
    # b2_ref : (C2, 1)           f32
    # o_ref  : (C2, W2)          f32, valid outputs at p = b*H*W + i*W + j (i<H-4, j<W-4)
    # mid_ref: (C1_p, W1)        bf16 scratch (conv1 activations)
    shifts = [dh * W + dw for dh in range(KH) for dw in range(KW)]

    # ---- conv1 + ReLU: im2col slab (9*Cin_p, W1) from 9 static lane-shifted ref loads,
    #      a single MXU matmul with K = 9*Cin_p, f32 accumulation. ----
    slab1 = jnp.concatenate([x_ref[:, s:s + W1] for s in shifts], axis=0)
    acc1 = jnp.dot(w1_ref[...], slab1, preferred_element_type=jnp.float32)   # (C1_p, W1)
    mid_ref[...] = jnp.maximum(acc1 + b1_ref[...], 0.0).astype(mid_ref.dtype)

    # ---- conv2 + ReLU: same, re-slicing the bf16 mid scratch ref. ----
    slab2 = jnp.concatenate([mid_ref[:, s:s + W2] for s in shifts], axis=0)
    acc2 = jnp.dot(w2_ref[...], slab2, preferred_element_type=jnp.float32)   # (C2, W2)
    o_ref[...] = jnp.maximum(acc2 + b2_ref[...], 0.0).astype(o_ref.dtype)


def fold_params(w1, b1, w2, b2):
    """One-time weight/bias regrouping (hoisted out of the per-call path).

    w1: (C1, Cin, 3, 3), b1: (C1,), w2: (C2, C1, 3, 3), b2: (C2,).
    Returns bf16 folded weights (Cout, KH*KW*Cin_padded) and f32 column biases.
    """
    C1, Cin = w1.shape[0], w1.shape[1]
    C2 = w2.shape[0]
    Cin_p = _round_up(Cin, SUB_BF16)
    C1_p = _round_up(C1, SUB_BF16)

    w1t = jnp.transpose(w1, (0, 2, 3, 1)).astype(jnp.float32)          # (C1, 3, 3, Cin)
    w1t = jnp.pad(w1t, ((0, C1_p - C1), (0, 0), (0, 0), (0, Cin_p - Cin)))
    w1f = w1t.reshape(C1_p, KH * KW * Cin_p).astype(jnp.bfloat16)
    b1c = jnp.pad(b1.astype(jnp.float32), (0, C1_p - C1)).reshape(C1_p, 1)

    w2t = jnp.transpose(w2, (0, 2, 3, 1)).astype(jnp.float32)          # (C2, 3, 3, C1)
    w2t = jnp.pad(w2t, ((0, 0), (0, 0), (0, 0), (0, C1_p - C1)))
    w2f = w2t.reshape(C2, KH * KW * C1_p).astype(jnp.bfloat16)
    b2c = b2.astype(jnp.float32).reshape(C2, 1)
    return w1f, b1c, w2f, b2c


def down_step(x_nchw, w1f, b1c, w2f, b2c):
    """x_nchw: (B, Cin, H, W) f32; folded params from fold_params().
    Returns NCHW (B, C2, H-4, W-4) f32."""
    B, Cin, H, W = x_nchw.shape
    C1_p = w1f.shape[0]
    Cin_p = w1f.shape[1] // (KH * KW)
    C2 = w2f.shape[0]

    NP = H * W
    Nout = B * NP                        # batch merged into the lane axis
    SH = (KH - 1) * W + (KW - 1)         # largest flat tap shift
    W2p = _round_up(Nout, LANE)          # conv2 / output working width (lane-dense)
    W1p = _round_up(W2p + SH, LANE)      # conv1 / mid width: only what conv2 consumes
    Wxp = _round_up(W1p + SH, LANE)      # zero-padded input lane width

    # Layout glue (plain JAX): channel-major, batch*pixels on lanes, zero channel/lane
    # padding, bf16 operands.  Taps that cross an image boundary only feed output
    # columns that the final [:H-4, :W-4] crop discards, so no per-image lane padding
    # is needed.
    x_flat = jnp.transpose(x_nchw, (1, 0, 2, 3)).reshape(Cin, Nout).astype(jnp.float32)
    x_pad = jnp.pad(x_flat, ((0, Cin_p - Cin), (0, Wxp - Nout))).astype(jnp.bfloat16)

    kernel = functools.partial(_down_step_kernel, W=W, W1=W1p, W2=W2p)

    out_flat = pl.pallas_call(
        kernel,
        out_shape=jax.ShapeDtypeStruct((C2, W2p), jnp.float32),
        grid=(1,),
        in_specs=[
            pl.BlockSpec((Cin_p, Wxp), lambda i: (0, 0)),
            pl.BlockSpec((C1_p, KH * KW * Cin_p), lambda i: (0, 0)),
            pl.BlockSpec((C1_p, 1), lambda i: (0, 0)),
            pl.BlockSpec((C2, KH * KW * C1_p), lambda i: (0, 0)),
            pl.BlockSpec((C2, 1), lambda i: (0, 0)),
        ],
        out_specs=pl.BlockSpec((C2, W2p), lambda i: (0, 0)),
        scratch_shapes=[pltpu.VMEM((C1_p, W1p), jnp.bfloat16)],
        compiler_params=pltpu.CompilerParams(dimension_semantics=("arbitrary",)),
    )(x_pad, w1f, b1c, w2f, b2c)

    # Valid conv outputs live at flat index b*H*W + i*W + j with i < H-4, j < W-4.
    out = (out_flat[:, :Nout]
           .reshape(C2, B, H, W)
           .transpose(1, 0, 2, 3)[:, :, :H - 4, :W - 4])
    return out


def ref_down_step(x_nchw, w1, b1, w2, b2):
    dn = ("NCHW", "OIHW", "NCHW")
    y = lax.conv_general_dilated(x_nchw, w1, (1, 1), "VALID", dimension_numbers=dn)
    y = jnp.maximum(y + b1[None, :, None, None], 0.0)
    y = lax.conv_general_dilated(y, w2, (1, 1), "VALID", dimension_numbers=dn)
    y = jnp.maximum(y + b2[None, :, None, None], 0.0)
    return y


if __name__ == "__main__":
    key = jax.random.PRNGKey(0)
    B, inC, outC, H, W = 2, 4, 8, 16, 16
    k = jax.random.split(key, 5)

    # Deterministic PyTorch-style (kaiming-uniform-ish) init.
    bnd1 = 1.0 / (inC * KH * KW) ** 0.5
    bnd2 = 1.0 / (outC * KH * KW) ** 0.5
    x = jax.random.normal(k[0], (B, inC, H, W), jnp.float32)
    w1 = jax.random.uniform(k[1], (outC, inC, KH, KW), jnp.float32, -bnd1, bnd1)
    b1 = jax.random.uniform(k[2], (outC,), jnp.float32, -bnd1, bnd1)
    w2 = jax.random.uniform(k[3], (outC, outC, KH, KW), jnp.float32, -bnd2, bnd2)
    b2 = jax.random.uniform(k[4], (outC,), jnp.float32, -bnd2, bnd2)

    folded = fold_params(w1, b1, w2, b2)          # one-time regrouping, outside the jit
    out = jax.block_until_ready(jax.jit(down_step)(x, *folded))
    ref = jax.block_until_ready(ref_down_step(x, w1, b1, w2, b2))

    assert out.shape == (B, outC, H - 4, W - 4), out.shape
    # bf16 MXU operands with f32 accumulation -> relaxed tolerance vs the f32 reference.
    err = float(jnp.max(jnp.abs(out - ref)))
    assert jnp.allclose(out, ref, atol=2e-2, rtol=2e-2), err
    print("KERNEL_OK")
</pallas_src>

<mosaic_0001>
module attributes {stable_mosaic.version = 11 : i64} {
  func.func @_down_step_kernel(%arg0: i32, %arg1: memref<16x768xbf16, #tpu.memory_space<vmem>>, %arg2: memref<16x144xbf16, #tpu.memory_space<vmem>>, %arg3: memref<16x1xf32, #tpu.memory_space<vmem>>, %arg4: memref<8x144xbf16, #tpu.memory_space<vmem>>, %arg5: memref<8x1xf32, #tpu.memory_space<vmem>>, %arg6: memref<8x512xf32, #tpu.memory_space<vmem>>, %arg7: memref<16x640xbf16, #tpu.memory_space<vmem>>) attributes {dimension_semantics = [#tpu.dimension_semantics<arbitrary>], iteration_bounds = array<i64: 1>, scalar_prefetch = 0 : i64, scratch_operands = 1 : i64, tpu.core_type = #tpu.core_type<tc>, window_params = [{pipeline_mode = #tpu.pipeline_mode<synchronous>, transform_indices = @transform_0, window_bounds = array<i64: 16, 768>}, {pipeline_mode = #tpu.pipeline_mode<synchronous>, transform_indices = @transform_1, window_bounds = array<i64: 16, 144>}, {pipeline_mode = #tpu.pipeline_mode<synchronous>, transform_indices = @transform_2, window_bounds = array<i64: 16, 1>}, {pipeline_mode = #tpu.pipeline_mode<synchronous>, transform_indices = @transform_3, window_bounds = array<i64: 8, 144>}, {pipeline_mode = #tpu.pipeline_mode<synchronous>, transform_indices = @transform_4, window_bounds = array<i64: 8, 1>}, {pipeline_mode = #tpu.pipeline_mode<synchronous>, transform_indices = @transform_5, window_bounds = array<i64: 8, 512>}]} {
    %c0 = arith.constant 0 : index
    %c0_0 = arith.constant 0 : index
    %0 = vector.load %arg1[%c0, %c0_0] : memref<16x768xbf16, #tpu.memory_space<vmem>>, vector<16x640xbf16>
    %c0_1 = arith.constant 0 : index
    %c1 = arith.constant 1 : index
    %1 = vector.load %arg1[%c0_1, %c1] : memref<16x768xbf16, #tpu.memory_space<vmem>>, vector<16x640xbf16>
    %c0_2 = arith.constant 0 : index
    %c2 = arith.constant 2 : index
    %2 = vector.load %arg1[%c0_2, %c2] : memref<16x768xbf16, #tpu.memory_space<vmem>>, vector<16x640xbf16>
    %c0_3 = arith.constant 0 : index
    %c16 = arith.constant 16 : index
    %3 = vector.load %arg1[%c0_3, %c16] : memref<16x768xbf16, #tpu.memory_space<vmem>>, vector<16x640xbf16>
    %c0_4 = arith.constant 0 : index
    %c17 = arith.constant 17 : index
    %4 = vector.load %arg1[%c0_4, %c17] : memref<16x768xbf16, #tpu.memory_space<vmem>>, vector<16x640xbf16>
    %c0_5 = arith.constant 0 : index
    %c18 = arith.constant 18 : index
    %5 = vector.load %arg1[%c0_5, %c18] : memref<16x768xbf16, #tpu.memory_space<vmem>>, vector<16x640xbf16>
    %c0_6 = arith.constant 0 : index
    %c32 = arith.constant 32 : index
    %6 = vector.load %arg1[%c0_6, %c32] : memref<16x768xbf16, #tpu.memory_space<vmem>>, vector<16x640xbf16>
    %c0_7 = arith.constant 0 : index
    %c33 = arith.constant 33 : index
    %7 = vector.load %arg1[%c0_7, %c33] : memref<16x768xbf16, #tpu.memory_space<vmem>>, vector<16x640xbf16>
    %c0_8 = arith.constant 0 : index
    %c34 = arith.constant 34 : index
    %8 = vector.load %arg1[%c0_8, %c34] : memref<16x768xbf16, #tpu.memory_space<vmem>>, vector<16x640xbf16>
    %9 = tpu.concatenate %0, %1, %2, %3, %4, %5, %6, %7, %8 in 0 : vector<16x640xbf16>, vector<16x640xbf16>, vector<16x640xbf16>, vector<16x640xbf16>, vector<16x640xbf16>, vector<16x640xbf16>, vector<16x640xbf16>, vector<16x640xbf16>, vector<16x640xbf16> -> vector<144x640xbf16>
    %c0_9 = arith.constant 0 : index
    %c0_10 = arith.constant 0 : index
    %10 = vector.load %arg2[%c0_9, %c0_10] : memref<16x144xbf16, #tpu.memory_space<vmem>>, vector<16x144xbf16>
    %cst = arith.constant dense<0.000000e+00> : vector<16x640xf32>
    %11 = tpu.matmul %10, %9, %cst {dimension_numbers = #tpu.dot_dimension_numbers<[1], [0], [0], [1], [0, 0, 1, 1], [], []>} : vector<16x144xbf16>, vector<144x640xbf16>, vector<16x640xf32> -> vector<16x640xf32>
    %c0_11 = arith.constant 0 : index
    %c0_12 = arith.constant 0 : index
    %12 = vector.load %arg3[%c0_11, %c0_12] : memref<16x1xf32, #tpu.memory_space<vmem>>, vector<16x1xf32>
    %13 = vector.broadcast %12 : vector<16x1xf32> to vector<16x640xf32>
    %14 = arith.addf %11, %13 : vector<16x640xf32>
    %cst_13 = arith.constant 0.000000e+00 : f32
    %15 = vector.broadcast %cst_13 : f32 to vector<16x640xf32>
    %16 = arith.maximumf %14, %15 : vector<16x640xf32>
    %17 = arith.truncf %16 : vector<16x640xf32> to vector<16x640xbf16>
    %c0_14 = arith.constant 0 : index
    %c0_15 = arith.constant 0 : index
    %18 = vector.load %arg7[%c0_14, %c0_15] : memref<16x640xbf16, #tpu.memory_space<vmem>>, vector<16x640xbf16>
    tpu.vector_store %arg7[%c0_14, %c0_15], %17 {strides = array<i32>} : memref<16x640xbf16, #tpu.memory_space<vmem>>, vector<16x640xbf16>,
    %c0_16 = arith.constant 0 : index
    %c0_17 = arith.constant 0 : index
    %19 = vector.load %arg7[%c0_16, %c0_17] : memref<16x640xbf16, #tpu.memory_space<vmem>>, vector<16x512xbf16>
    %c0_18 = arith.constant 0 : index
    %c1_19 = arith.constant 1 : index
    %20 = vector.load %arg7[%c0_18, %c1_19] : memref<16x640xbf16, #tpu.memory_space<vmem>>, vector<16x512xbf16>
    %c0_20 = arith.constant 0 : index
    %c2_21 = arith.constant 2 : index
    %21 = vector.load %arg7[%c0_20, %c2_21] : memref<16x640xbf16, #tpu.memory_space<vmem>>, vector<16x512xbf16>
    %c0_22 = arith.constant 0 : index
    %c16_23 = arith.constant 16 : index
    %22 = vector.load %arg7[%c0_22, %c16_23] : memref<16x640xbf16, #tpu.memory_space<vmem>>, vector<16x512xbf16>
    %c0_24 = arith.constant 0 : index
    %c17_25 = arith.constant 17 : index
    %23 = vector.load %arg7[%c0_24, %c17_25] : memref<16x640xbf16, #tpu.memory_space<vmem>>, vector<16x512xbf16>
    %c0_26 = arith.constant 0 : index
    %c18_27 = arith.constant 18 : index
    %24 = vector.load %arg7[%c0_26, %c18_27] : memref<16x640xbf16, #tpu.memory_space<vmem>>, vector<16x512xbf16>
    %c0_28 = arith.constant 0 : index
    %c32_29 = arith.constant 32 : index
    %25 = vector.load %arg7[%c0_28, %c32_29] : memref<16x640xbf16, #tpu.memory_space<vmem>>, vector<16x512xbf16>
    %c0_30 = arith.constant 0 : index
    %c33_31 = arith.constant 33 : index
    %26 = vector.load %arg7[%c0_30, %c33_31] : memref<16x640xbf16, #tpu.memory_space<vmem>>, vector<16x512xbf16>
    %c0_32 = arith.constant 0 : index
    %c34_33 = arith.constant 34 : index
    %27 = vector.load %arg7[%c0_32, %c34_33] : memref<16x640xbf16, #tpu.memory_space<vmem>>, vector<16x512xbf16>
    %28 = tpu.concatenate %19, %20, %21, %22, %23, %24, %25, %26, %27 in 0 : vector<16x512xbf16>, vector<16x512xbf16>, vector<16x512xbf16>, vector<16x512xbf16>, vector<16x512xbf16>, vector<16x512xbf16>, vector<16x512xbf16>, vector<16x512xbf16>, vector<16x512xbf16> -> vector<144x512xbf16>
    %c0_34 = arith.constant 0 : index
    %c0_35 = arith.constant 0 : index
    %29 = vector.load %arg4[%c0_34, %c0_35] : memref<8x144xbf16, #tpu.memory_space<vmem>>, vector<8x144xbf16>
    %cst_36 = arith.constant dense<0.000000e+00> : vector<8x512xf32>
    %30 = tpu.matmul %29, %28, %cst_36 {dimension_numbers = #tpu.dot_dimension_numbers<[1], [0], [0], [1], [0, 0, 1, 1], [], []>} : vector<8x144xbf16>, vector<144x512xbf16>, vector<8x512xf32> -> vector<8x512xf32>
    %c0_37 = arith.constant 0 : index
    %c0_38 = arith.constant 0 : index
    %31 = vector.load %arg5[%c0_37, %c0_38] : memref<8x1xf32, #tpu.memory_space<vmem>>, vector<8x1xf32>
    %32 = vector.broadcast %31 : vector<8x1xf32> to vector<8x512xf32>
    %33 = arith.addf %30, %32 : vector<8x512xf32>
    %cst_39 = arith.constant 0.000000e+00 : f32
    %34 = vector.broadcast %cst_39 : f32 to vector<8x512xf32>
    %35 = arith.maximumf %33, %34 : vector<8x512xf32>
    %c0_40 = arith.constant 0 : index
    %c0_41 = arith.constant 0 : index
    %36 = vector.load %arg6[%c0_40, %c0_41] : memref<8x512xf32, #tpu.memory_space<vmem>>, vector<8x512xf32>
    tpu.vector_store %arg6[%c0_40, %c0_41], %35 {strides = array<i32>} : memref<8x512xf32, #tpu.memory_space<vmem>>, vector<8x512xf32>,
    return
  }
  func.func @transform_0(%arg0: i32) -> (i32, i32) {
    %c0_i32 = arith.constant 0 : i32
    %c0_i32_0 = arith.constant 0 : i32
    %c0_i32_1 = arith.constant 0 : i32
    return %c0_i32, %c0_i32_0 : i32, i32
  }
  func.func @transform_1(%arg0: i32) -> (i32, i32) {
    %c0_i32 = arith.constant 0 : i32
    %c0_i32_0 = arith.constant 0 : i32
    %c0_i32_1 = arith.constant 0 : i32
    return %c0_i32, %c0_i32_0 : i32, i32
  }
  func.func @transform_2(%arg0: i32) -> (i32, i32) {
    %c0_i32 = arith.constant 0 : i32
    %c0_i32_0 = arith.constant 0 : i32
    %c0_i32_1 = arith.constant 0 : i32
    return %c0_i32, %c0_i32_0 : i32, i32
  }
  func.func @transform_3(%arg0: i32) -> (i32, i32) {
    %c0_i32 = arith.constant 0 : i32
    %c0_i32_0 = arith.constant 0 : i32
    %c0_i32_1 = arith.constant 0 : i32
    return %c0_i32, %c0_i32_0 : i32, i32
  }
  func.func @transform_4(%arg0: i32) -> (i32, i32) {
    %c0_i32 = arith.constant 0 : i32
    %c0_i32_0 = arith.constant 0 : i32
    %c0_i32_1 = arith.constant 0 : i32
    return %c0_i32, %c0_i32_0 : i32, i32
  }
  func.func @transform_5(%arg0: i32) -> (i32, i32) {
    %c0_i32 = arith.constant 0 : i32
    %c0_i32_0 = arith.constant 0 : i32
    %c0_i32_1 = arith.constant 0 : i32
    return %c0_i32, %c0_i32_0 : i32, i32
  }
}

</mosaic_0001>

<llo_original>
// kernel: down_step.1
$region0: #{down_step.1}
  #allocation0 [shape = 'u32[]', space=smem, size = 0x4, offset = 0x4, fixed_abs, tag = 'smem constant byte address 0x4 - core index']
  #allocation1 [shape = 'u32[144,128]{1,0:T(1,128)}', space=vmem, size = 0x12000, scoped, tag = 'internal scratch']
  #allocation2 [shape = 'bf16[16,640]{1,0:T(16,128)(2,1)}', space=vmem, size = 0x5000, scoped, tag = 'scratch operand']
  %s0 = inlined_call_operand.vmem [shape: bf16[16,768], index: 0, kind: input, shape index: {}]
  %s1 = inlined_call_operand.vmem [shape: bf16[16,144], index: 1, kind: input, shape index: {}]
  %s2 = inlined_call_operand.vmem [shape: f32[16,1], index: 2, kind: input, shape index: {}]
  %s3 = inlined_call_operand.vmem [shape: bf16[8,144], index: 3, kind: input, shape index: {}]
  %s4 = inlined_call_operand.vmem [shape: f32[8,1], index: 4, kind: input, shape index: {}]
  %s5 = inlined_call_operand.vmem [shape: f32[8,512], index: 5, kind: output, shape index: {}]
  %s6 = sld [smem:[#allocation0]]
  $region30: #{down_step.1} parent=0
    _
  %s8 = ssub.s32 1, %s6
  %s9 = scalar_select 0, %s8, %s6
  // Predicated region
  $region2: #{down_step.1} parent=0 // pred_check
    _
  $region3: #{down_step.1} parent=0 // pred_check_branch
    %11 = sbr.rel (0) target = $region5
  $region4: #{down_step.1} parent=0 // pred_region
    _
  $region5: #{down_step.1} parent=0 // pred_fallthru
    _
  // Predicated region
  $region6: #{down_step.1} parent=0 // pred_check
    _
  $region7: #{down_step.1} parent=0 // pred_check_branch
    %13 = sbr.rel (0) target = $region9
  $region8: #{down_step.1} parent=0 // pred_region
    _
  $region9: #{down_step.1} parent=0 // pred_fallthru
    _
  // Predicated region
  $region10: #{down_step.1} parent=0 // pred_check
    _
  $region11: #{down_step.1} parent=0 // pred_check_branch
    %15 = sbr.rel (0) target = $region13
  $region12: #{down_step.1} parent=0 // pred_region
    _
  $region13: #{down_step.1} parent=0 // pred_fallthru
    _
  // Predicated region
  $region14: #{down_step.1} parent=0 // pred_check
    _
  $region15: #{down_step.1} parent=0 // pred_check_branch
    %17 = sbr.rel (0) target = $region17
  $region16: #{down_step.1} parent=0 // pred_region
    _
  $region17: #{down_step.1} parent=0 // pred_fallthru
    _
  // Predicated region
  $region18: #{down_step.1} parent=0 // pred_check
    _
  $region19: #{down_step.1} parent=0 // pred_check_branch
    %19 = sbr.rel (0) target = $region21
  $region20: #{down_step.1} parent=0 // pred_region
    _
  $region21: #{down_step.1} parent=0 // pred_fallthru
    _
  %v21 = vld [vmem:[%s0] sm:$0xff]
  %v22 = vld [vmem:[%s0 + $0x8] sm:$0xff]
  %v23 = vld [vmem:[%s0 + $0x10] sm:$0xf]
  %v24 = vld [vmem:[%s0 + $0x18] sm:$0xff]
  %v25 = vld [vmem:[%s0 + $0x20] sm:$0xff]
  %v26 = vld [vmem:[%s0 + $0x28] sm:$0xf]
  %v27 = vld [vmem:[%s0] sm:$0xff]
  %v28 = vld [vmem:[%s0 + $0x8] sm:$0xff]
  %v29 = vld [vmem:[%s0 + $0x10] sm:$0xff]
  %v30 = vld [vmem:[%s0 + $0x18] sm:$0xff]
  %v31 = vld [vmem:[%s0 + $0x20] sm:$0xff]
  %v32 = vld [vmem:[%s0 + $0x28] sm:$0xff]
  %v39 = vunpack.c.l.b16 %v21
  %v40 = vunpack.c.h.b16 %v21
  %v41 = vunpack.c.l.b16 %v22
  %v42 = vunpack.c.h.b16 %v22
  %v43 = vunpack.c.l.b16 %v23
  %v44 = vunpack.c.l.b16 %v24
  %v45 = vunpack.c.h.b16 %v24
  %v46 = vunpack.c.l.b16 %v25
  %v47 = vunpack.c.h.b16 %v25
  %v48 = vunpack.c.l.b16 %v26
  %v49 = vpack.c.b16 %v44, %v39
  %v50 = vpack.c.b16 %v45, %v40
  %v51 = vpack.c.b16 %v46, %v41
  %v52 = vpack.c.b16 %v47, %v42
  %v53 = vpack.c.b16 %v48, %v43
  %v65 = vunpack.c.l.b16 %v27
  %v66 = vunpack.c.h.b16 %v27
  %v67 = vunpack.c.l.b16 %v28
  %v68 = vunpack.c.h.b16 %v28
  %v69 = vunpack.c.l.b16 %v29
  %v70 = vunpack.c.h.b16 %v29
  %v71 = vunpack.c.l.b16 %v30
  %v72 = vunpack.c.h.b16 %v30
  %v73 = vunpack.c.l.b16 %v31
  %v74 = vunpack.c.h.b16 %v31
  %v75 = vunpack.c.l.b16 %v32
  %v76 = vunpack.c.h.b16 %v32
  %v77 = vpack.c.b16 %v71, %v65
  %v78 = vpack.c.b16 %v72, %v66
  %v79 = vpack.c.b16 %v73, %v67
  %v80 = vpack.c.b16 %v74, %v68
  %v81 = vpack.c.b16 %v75, %v69
  %v82 = vpack.c.b16 %v76, %v70
  %83 = vrot.lane.b32.xlu0 %v77, 127
  %v84 = vpop.permute.xlu0 %83
  %85 = vrot.lane.b32.xlu0 %v78, 127
  %v86 = vpop.permute.xlu0 %85
  %87 = vrot.lane.b32.xlu0 %v79, 127
  %v88 = vpop.permute.xlu0 %87
  %89 = vrot.lane.b32.xlu0 %v80, 127
  %v90 = vpop.permute.xlu0 %89
  %91 = vrot.lane.b32.xlu0 %v81, 127
  %v92 = vpop.permute.xlu0 %91
  %93 = vrot.lane.b32.xlu0 %v82, 127
  %v94 = vpop.permute.xlu0 %93
  %vm95 = vcmask 1039360
  %v96 = vsel %vm95, %v84, %v86
  %v97 = vsel %vm95, %v86, %v88
  %v98 = vsel %vm95, %v88, %v90
  %v99 = vsel %vm95, %v90, %v92
  %v100 = vsel %vm95, %v92, %v94
  %106 = vrot.lane.b32.xlu0 %v77, 126
  %v107 = vpop.permute.xlu0 %106
  %108 = vrot.lane.b32.xlu0 %v78, 126
  %v109 = vpop.permute.xlu0 %108
  %110 = vrot.lane.b32.xlu0 %v79, 126
  %v111 = vpop.permute.xlu0 %110
  %112 = vrot.lane.b32.xlu0 %v80, 126
  %v113 = vpop.permute.xlu0 %112
  %114 = vrot.lane.b32.xlu0 %v81, 126
  %v115 = vpop.permute.xlu0 %114
  %116 = vrot.lane.b32.xlu0 %v82, 126
  %v117 = vpop.permute.xlu0 %116
  %vm118 = vcmask 1031168
  %v119 = vsel %vm118, %v107, %v109
  %v120 = vsel %vm118, %v109, %v111
  %v121 = vsel %vm118, %v111, %v113
  %v122 = vsel %vm118, %v113, %v115
  %v123 = vsel %vm118, %v115, %v117
  %129 = vrot.lane.b32.xlu0 %v77, 112
  %v130 = vpop.permute.xlu0 %129
  %131 = vrot.lane.b32.xlu0 %v78, 112
  %v132 = vpop.permute.xlu0 %131
  %133 = vrot.lane.b32.xlu0 %v79, 112
  %v134 = vpop.permute.xlu0 %133
  %135 = vrot.lane.b32.xlu0 %v80, 112
  %v136 = vpop.permute.xlu0 %135
  %137 = vrot.lane.b32.xlu0 %v81, 112
  %v138 = vpop.permute.xlu0 %137
  %139 = vrot.lane.b32.xlu0 %v82, 112
  %v140 = vpop.permute.xlu0 %139
  %vm141 = vcmask 916480
  %v142 = vsel %vm141, %v130, %v132
  %v143 = vsel %vm141, %v132, %v134
  %v144 = vsel %vm141, %v134, %v136
  %v145 = vsel %vm141, %v136, %v138
  %v146 = vsel %vm141, %v138, %v140
  %152 = vrot.lane.b32.xlu0 %v77, 111
  %v153 = vpop.permute.xlu0 %152
  %154 = vrot.lane.b32.xlu0 %v78, 111
  %v155 = vpop.permute.xlu0 %154
  %156 = vrot.lane.b32.xlu0 %v79, 111
  %v157 = vpop.permute.xlu0 %156
  %158 = vrot.lane.b32.xlu0 %v80, 111
  %v159 = vpop.permute.xlu0 %158
  %160 = vrot.lane.b32.xlu0 %v81, 111
  %v161 = vpop.permute.xlu0 %160
  %162 = vrot.lane.b32.xlu0 %v82, 111
  %v163 = vpop.permute.xlu0 %162
  %vm164 = vcmask 908288
  %v165 = vsel %vm164, %v153, %v155
  %v166 = vsel %vm164, %v155, %v157
  %v167 = vsel %vm164, %v157, %v159
  %v168 = vsel %vm164, %v159, %v161
  %v169 = vsel %vm164, %v161, %v163
  %175 = vrot.lane.b32.xlu0 %v77, 110
  %v176 = vpop.permute.xlu0 %175
  %177 = vrot.lane.b32.xlu0 %v78, 110
  %v178 = vpop.permute.xlu0 %177
  %179 = vrot.lane.b32.xlu0 %v79, 110
  %v180 = vpop.permute.xlu0 %179
  %181 = vrot.lane.b32.xlu0 %v80, 110
  %v182 = vpop.permute.xlu0 %181
  %183 = vrot.lane.b32.xlu0 %v81, 110
  %v184 = vpop.permute.xlu0 %183
  %185 = vrot.lane.b32.xlu0 %v82, 110
  %v186 = vpop.permute.xlu0 %185
  %vm187 = vcmask 900096
  %v188 = vsel %vm187, %v176, %v178
  %v189 = vsel %vm187, %v178, %v180
  %v190 = vsel %vm187, %v180, %v182
  %v191 = vsel %vm187, %v182, %v184
  %v192 = vsel %vm187, %v184, %v186
  %198 = vrot.lane.b32.xlu0 %v77, 96
  %v199 = vpop.permute.xlu0 %198
  %200 = vrot.lane.b32.xlu0 %v78, 96
  %v201 = vpop.permute.xlu0 %200
  %202 = vrot.lane.b32.xlu0 %v79, 96
  %v203 = vpop.permute.xlu0 %202
  %204 = vrot.lane.b32.xlu0 %v80, 96
  %v205 = vpop.permute.xlu0 %204
  %206 = vrot.lane.b32.xlu0 %v81, 96
  %v207 = vpop.permute.xlu0 %206
  %208 = vrot.lane.b32.xlu0 %v82, 96
  %v209 = vpop.permute.xlu0 %208
  %vm210 = vcmask 785408
  %v211 = vsel %vm210, %v199, %v201
  %v212 = vsel %vm210, %v201, %v203
  %v213 = vsel %vm210, %v203, %v205
  %v214 = vsel %vm210, %v205, %v207
  %v215 = vsel %vm210, %v207, %v209
  %221 = vrot.lane.b32.xlu0 %v77, 95
  %v222 = vpop.permute.xlu0 %221
  %223 = vrot.lane.b32.xlu0 %v78, 95
  %v224 = vpop.permute.xlu0 %223
  %225 = vrot.lane.b32.xlu0 %v79, 95
  %v226 = vpop.permute.xlu0 %225
  %227 = vrot.lane.b32.xlu0 %v80, 95
  %v228 = vpop.permute.xlu0 %227
  %229 = vrot.lane.b32.xlu0 %v81, 95
  %v230 = vpop.permute.xlu0 %229
  %231 = vrot.lane.b32.xlu0 %v82, 95
  %v232 = vpop.permute.xlu0 %231
  %vm233 = vcmask 777216
  %v234 = vsel %vm233, %v222, %v224
  %v235 = vsel %vm233, %v224, %v226
  %v236 = vsel %vm233, %v226, %v228
  %v237 = vsel %vm233, %v228, %v230
  %v238 = vsel %vm233, %v230, %v232
  %244 = vrot.lane.b32.xlu0 %v77, 94
  %v245 = vpop.permute.xlu0 %244
  %246 = vrot.lane.b32.xlu0 %v78, 94
  %v247 = vpop.permute.xlu0 %246
  %248 = vrot.lane.b32.xlu0 %v79, 94
  %v249 = vpop.permute.xlu0 %248
  %250 = vrot.lane.b32.xlu0 %v80, 94
  %v251 = vpop.permute.xlu0 %250
  %252 = vrot.lane.b32.xlu0 %v81, 94
  %v253 = vpop.permute.xlu0 %252
  %254 = vrot.lane.b32.xlu0 %v82, 94
  %v255 = vpop.permute.xlu0 %254
  %vm256 = vcmask 769024
  %v257 = vsel %vm256, %v245, %v247
  %v258 = vsel %vm256, %v247, %v249
  %v259 = vsel %vm256, %v249, %v251
  %v260 = vsel %vm256, %v251, %v253
  %v261 = vsel %vm256, %v253, %v255
  %v267 = vld [vmem:[%s1] sm:$0xff]
  %v268 = vld [vmem:[%s1 + $0x8] sm:$0xff]
  %v269 = vld [vmem:[%s2] sm:$0xff]
  %v270 = vld [vmem:[%s2 + $0x8] sm:$0xff]
  %272 = vset.pattern.permute.xlu0 0
  %273 = vperm.xlu0 %272, %v269
  %v274 = vpop.permute.xlu0 %273
  %277 = vset.pattern.permute.xlu0 0
  %278 = vperm.xlu0 %277, %v270
  %v279 = vpop.permute.xlu0 %278
  %v283 = vunpack.c.l.b16 %v267
  %v284 = vunpack.c.h.b16 %v267
  %v285 = vunpack.c.l.b16 %v268
  %v286 = vunpack.c.h.b16 %v268
  %v287 = vpack.c.b16 %v285, %v283
  %v288 = vpack.c.b16 %v286, %v284
  %vm290 = vcmask 130048
  %v292 = vsel %vm290, %v288, 0
  %294 = vmatprep.subr.bf16.mxu0 %v50
  %295 = vmatpush1.bf16.msra.mxu0 %v49
  %296 = vmatprep.subr.bf16.mxu0 %v97
  %297 = vmatpush1.bf16.msra.mxu0 %v96
  %298 = vmatprep.subr.bf16.mxu0 %v120
  %299 = vmatpush1.bf16.msra.mxu0 %v119
  %300 = vmatprep.subr.bf16.mxu0 %v143
  %301 = vmatpush1.bf16.msra.mxu0 %v142
  %302 = vmatprep.subr.bf16.mxu0 %v166
  %303 = vmatpush1.bf16.msra.mxu0 %v165
  %304 = vmatprep.subr.bf16.mxu0 %v189
  %305 = vmatpush1.bf16.msra.mxu0 %v188
  %306 = vmatprep.subr.bf16.mxu0 %v212
  %307 = vmatpush1.bf16.msra.mxu0 %v211
  %308 = vmatprep.subr.bf16.mxu0 %v235
  %309 = vmatpush1.bf16.msra.mxu0 %v234
  %310 = vmatprep.subr.bf16.mxu0 %v258
  %311 = vmatpush1.bf16.msra.mxu0 %v257
  %312 = vmatprep.subr.bf16.mxu0 0
  %313 = vmatpush1.bf16.msra.mxu0 0
  %314 = vmatprep.subr.bf16.mxu0 0
  %315 = vmatpush1.bf16.msra.mxu0 0
  %316 = vmatprep.subr.bf16.mxu0 0
  %317 = vmatpush1.bf16.msra.mxu0 0
  %318 = vmatprep.subr.bf16.mxu0 0
  %319 = vmatpush1.bf16.msra.mxu0 0
  %320 = vmatprep.subr.bf16.mxu0 0
  %321 = vmatpush1.bf16.msra.mxu0 0
  %322 = vmatprep.subr.bf16.mxu0 0
  %323 = vmatpush1.bf16.msra.mxu0 0
  %324 = vmatprep.subr.bf16.mxu0 0
  %325 = vmatpush1.bf16.msra.mxu0 0
  %326 = vmatprep.mubr.bf16.mxu0 %v292
  %327 = vmatmul.mubr.bf16.gmra.mrb[0].mxu0 %v287
  %v328 = vpop.f32.mrb[0].mxu0
  %v329 = vadd.f32 %v274, %v328
  %v330 = vpop.f32.mrb[0].mxu0
  %v331 = vadd.f32 %v274, %v330
  %v332 = vpop.f32.mrb[0].mxu0
  %v333 = vadd.f32 %v279, %v332
  %v334 = vpop.f32.mrb[0].mxu0
  %v335 = vadd.f32 %v279, %v334
  %336 = vdwg.mxu0
  %337 = vmatprep.subr.bf16.mxu0 %v52
  %338 = vmatpush1.bf16.msra.mxu0 %v51
  %339 = vmatprep.subr.bf16.mxu0 %v99
  %340 = vmatpush1.bf16.msra.mxu0 %v98
  %341 = vmatprep.subr.bf16.mxu0 %v122
  %342 = vmatpush1.bf16.msra.mxu0 %v121
  %343 = vmatprep.subr.bf16.mxu0 %v145
  %344 = vmatpush1.bf16.msra.mxu0 %v144
  %345 = vmatprep.subr.bf16.mxu0 %v168
  %346 = vmatpush1.bf16.msra.mxu0 %v167
  %347 = vmatprep.subr.bf16.mxu0 %v191
  %348 = vmatpush1.bf16.msra.mxu0 %v190
  %349 = vmatprep.subr.bf16.mxu0 %v214
  %350 = vmatpush1.bf16.msra.mxu0 %v213
  %351 = vmatprep.subr.bf16.mxu0 %v237
  %352 = vmatpush1.bf16.msra.mxu0 %v236
  %353 = vmatprep.subr.bf16.mxu0 %v260
  %354 = vmatpush1.bf16.msra.mxu0 %v259
  %355 = vmatprep.subr.bf16.mxu0 0
  %356 = vmatpush1.bf16.msra.mxu0 0
  %357 = vmatprep.subr.bf16.mxu0 0
  %358 = vmatpush1.bf16.msra.mxu0 0
  %359 = vmatprep.subr.bf16.mxu0 0
  %360 = vmatpush1.bf16.msra.mxu0 0
  %361 = vmatprep.subr.bf16.mxu0 0
  %362 = vmatpush1.bf16.msra.mxu0 0
  %363 = vmatprep.subr.bf16.mxu0 0
  %364 = vmatpush1.bf16.msra.mxu0 0
  %365 = vmatprep.subr.bf16.mxu0 0
  %366 = vmatpush1.bf16.msra.mxu0 0
  %367 = vmatprep.subr.bf16.mxu0 0
  %368 = vmatpush1.bf16.msra.mxu0 0
  %369 = vmatprep.mubr.bf16.mxu0 %v292
  %370 = vmatmul.mubr.bf16.gmra.mrb[0].mxu0 %v287
  %v371 = vpop.f32.mrb[0].mxu0
  %v372 = vadd.f32 %v274, %v371
  %v373 = vpop.f32.mrb[0].mxu0
  %v374 = vadd.f32 %v274, %v373
  %v375 = vpop.f32.mrb[0].mxu0
  %v376 = vadd.f32 %v279, %v375
  %v377 = vpop.f32.mrb[0].mxu0
  %v378 = vadd.f32 %v279, %v377
  %379 = vdwg.mxu0
  %380 = vmatprep.subr.bf16.mxu0 0
  %381 = vmatpush1.bf16.msra.mxu0 %v53
  %382 = vmatprep.subr.bf16.mxu0 0
  %383 = vmatpush1.bf16.msra.mxu0 %v100
  %384 = vmatprep.subr.bf16.mxu0 0
  %385 = vmatpush1.bf16.msra.mxu0 %v123
  %386 = vmatprep.subr.bf16.mxu0 0
  %387 = vmatpush1.bf16.msra.mxu0 %v146
  %388 = vmatprep.subr.bf16.mxu0 0
  %389 = vmatpush1.bf16.msra.mxu0 %v169
  %390 = vmatprep.subr.bf16.mxu0 0
  %391 = vmatpush1.bf16.msra.mxu0 %v192
  %392 = vmatprep.subr.bf16.mxu0 0
  %393 = vmatpush1.bf16.msra.mxu0 %v215
  %394 = vmatprep.subr.bf16.mxu0 0
  %395 = vmatpush1.bf16.msra.mxu0 %v238
  %396 = vmatprep.subr.bf16.mxu0 0
  %397 = vmatpush1.bf16.msra.mxu0 %v261
  %398 = vmatprep.subr.bf16.mxu0 0
  %399 = vmatpush1.bf16.msra.mxu0 0
  %400 = vmatprep.subr.bf16.mxu0 0
  %401 = vmatpush1.bf16.msra.mxu0 0
  %402 = vmatprep.subr.bf16.mxu0 0
  %403 = vmatpush1.bf16.msra.mxu0 0
  %404 = vmatprep.subr.bf16.mxu0 0
  %405 = vmatpush1.bf16.msra.mxu0 0
  %406 = vmatprep.subr.bf16.mxu0 0
  %407 = vmatpush1.bf16.msra.mxu0 0
  %408 = vmatprep.subr.bf16.mxu0 0
  %409 = vmatpush1.bf16.msra.mxu0 0
  %410 = vmatprep.subr.bf16.mxu0 0
  %411 = vmatpush1.bf16.msra.mxu0 0
  %412 = vmatprep.mubr.bf16.mxu0 %v292
  %413 = vmatmul.mubr.bf16.gmra.mrb[0].mxu0 %v287
  %v414 = vpop.f32.mrb[0].mxu0
  %v415 = vadd.f32 %v274, %v414
  %v416 = vpop.f32.mrb[0].mxu0
  %v417 = vpop.f32.mrb[0].mxu0
  %v418 = vadd.f32 %v279, %v417
  %v419 = vpop.f32.mrb[0].mxu0
  %420 = vdwg.mxu0
  %v421 = vmax.f32 %v329, 0.0
  %v422 = vmax.f32 %v331, 0.0
  %v423 = vmax.f32 %v372, 0.0
  %v424 = vmax.f32 %v374, 0.0
  %v425 = vmax.f32 %v415, 0.0
  %v426 = vmax.f32 %v333, 0.0
  %v427 = vmax.f32 %v335, 0.0
  %v428 = vmax.f32 %v376, 0.0
  %v429 = vmax.f32 %v378, 0.0
  %v430 = vmax.f32 %v418, 0.0
  %v431 = vpack.c.bf16 %v426, %v421
  %v432 = vpack.c.bf16 %v427, %v422
  %v433 = vpack.c.bf16 %v428, %v423
  %v434 = vpack.c.bf16 %v429, %v424
  %v435 = vpack.c.bf16 %v430, %v425
  %436 = vst [vmem:[#allocation2] sm:$0xff] %v431
  %437 = vst [vmem:[#allocation2 + $0x8] sm:$0xff] %v432
  %438 = vst [vmem:[#allocation2 + $0x10] sm:$0xff] %v433
  %439 = vst [vmem:[#allocation2 + $0x18] sm:$0xff] %v434
  %440 = vst [vmem:[#allocation2 + $0x20] sm:$0xff] %v435
  %v441 = vld [vmem:[#allocation2] sm:$0xff]
  %v442 = vld [vmem:[#allocation2 + $0x8] sm:$0xff]
  %v443 = vld [vmem:[#allocation2 + $0x10] sm:$0xff]
  %v444 = vld [vmem:[#allocation2 + $0x18] sm:$0xff]
  %v445 = vld [vmem:[#allocation2] sm:$0xff]
  %v446 = vld [vmem:[#allocation2 + $0x8] sm:$0xff]
  %v447 = vld [vmem:[#allocation2 + $0x10] sm:$0xff]
  %v448 = vld [vmem:[#allocation2 + $0x18] sm:$0xff]
  %v449 = vld [vmem:[#allocation2 + $0x20] sm:$0xff]
  %455 = vrot.lane.b32.xlu0 %v445, 127
  %v456 = vpop.permute.xlu0 %455
  %457 = vrot.lane.b32.xlu0 %v446, 127
  %v458 = vpop.permute.xlu0 %457
  %459 = vrot.lane.b32.xlu0 %v447, 127
  %v460 = vpop.permute.xlu0 %459
  %461 = vrot.lane.b32.xlu0 %v448, 127
  %v462 = vpop.permute.xlu0 %461
  %463 = vrot.lane.b32.xlu0 %v449, 127
  %v464 = vpop.permute.xlu0 %463
  %v465 = vsel %vm95, %v456, %v458
  %v466 = vsel %vm95, %v458, %v460
  %v467 = vsel %vm95, %v460, %v462
  %v468 = vsel %vm95, %v462, %v464
  %473 = vrot.lane.b32.xlu0 %v445, 126
  %v474 = vpop.permute.xlu0 %473
  %475 = vrot.lane.b32.xlu0 %v446, 126
  %v476 = vpop.permute.xlu0 %475
  %477 = vrot.lane.b32.xlu0 %v447, 126
  %v478 = vpop.permute.xlu0 %477
  %479 = vrot.lane.b32.xlu0 %v448, 126
  %v480 = vpop.permute.xlu0 %479
  %481 = vrot.lane.b32.xlu0 %v449, 126
  %v482 = vpop.permute.xlu0 %481
  %v483 = vsel %vm118, %v474, %v476
  %v484 = vsel %vm118, %v476, %v478
  %v485 = vsel %vm118, %v478, %v480
  %v486 = vsel %vm118, %v480, %v482
  %491 = vrot.lane.b32.xlu0 %v445, 112
  %v492 = vpop.permute.xlu0 %491
  %493 = vrot.lane.b32.xlu0 %v446, 112
  %v494 = vpop.permute.xlu0 %493
  %495 = vrot.lane.b32.xlu0 %v447, 112
  %v496 = vpop.permute.xlu0 %495
  %497 = vrot.lane.b32.xlu0 %v448, 112
  %v498 = vpop.permute.xlu0 %497
  %499 = vrot.lane.b32.xlu0 %v449, 112
  %v500 = vpop.permute.xlu0 %499
  %v501 = vsel %vm141, %v492, %v494
  %v502 = vsel %vm141, %v494, %v496
  %v503 = vsel %vm141, %v496, %v498
  %v504 = vsel %vm141, %v498, %v500
  %509 = vrot.lane.b32.xlu0 %v445, 111
  %v510 = vpop.permute.xlu0 %509
  %511 = vrot.lane.b32.xlu0 %v446, 111
  %v512 = vpop.permute.xlu0 %511
  %513 = vrot.lane.b32.xlu0 %v447, 111
  %v514 = vpop.permute.xlu0 %513
  %515 = vrot.lane.b32.xlu0 %v448, 111
  %v516 = vpop.permute.xlu0 %515
  %517 = vrot.lane.b32.xlu0 %v449, 111
  %v518 = vpop.permute.xlu0 %517
  %v519 = vsel %vm164, %v510, %v512
  %v520 = vsel %vm164, %v512, %v514
  %v521 = vsel %vm164, %v514, %v516
  %v522 = vsel %vm164, %v516, %v518
  %527 = vrot.lane.b32.xlu0 %v445, 110
  %v528 = vpop.permute.xlu0 %527
  %529 = vrot.lane.b32.xlu0 %v446, 110
  %v530 = vpop.permute.xlu0 %529
  %531 = vrot.lane.b32.xlu0 %v447, 110
  %v532 = vpop.permute.xlu0 %531
  %533 = vrot.lane.b32.xlu0 %v448, 110
  %v534 = vpop.permute.xlu0 %533
  %535 = vrot.lane.b32.xlu0 %v449, 110
  %v536 = vpop.permute.xlu0 %535
  %v537 = vsel %vm187, %v528, %v530
  %v538 = vsel %vm187, %v530, %v532
  %v539 = vsel %vm187, %v532, %v534
  %v540 = vsel %vm187, %v534, %v536
  %545 = vrot.lane.b32.xlu0 %v445, 96
  %v546 = vpop.permute.xlu0 %545
  %547 = vrot.lane.b32.xlu0 %v446, 96
  %v548 = vpop.permute.xlu0 %547
  %549 = vrot.lane.b32.xlu0 %v447, 96
  %v550 = vpop.permute.xlu0 %549
  %551 = vrot.lane.b32.xlu0 %v448, 96
  %v552 = vpop.permute.xlu0 %551
  %553 = vrot.lane.b32.xlu0 %v449, 96
  %v554 = vpop.permute.xlu0 %553
  %v555 = vsel %vm210, %v546, %v548
  %v556 = vsel %vm210, %v548, %v550
  %v557 = vsel %vm210, %v550, %v552
  %v558 = vsel %vm210, %v552, %v554
  %563 = vrot.lane.b32.xlu0 %v445, 95
  %v564 = vpop.permute.xlu0 %563
  %565 = vrot.lane.b32.xlu0 %v446, 95
  %v566 = vpop.permute.xlu0 %565
  %567 = vrot.lane.b32.xlu0 %v447, 95
  %v568 = vpop.permute.xlu0 %567
  %569 = vrot.lane.b32.xlu0 %v448, 95
  %v570 = vpop.permute.xlu0 %569
  %571 = vrot.lane.b32.xlu0 %v449, 95
  %v572 = vpop.permute.xlu0 %571
  %v573 = vsel %vm233, %v564, %v566
  %v574 = vsel %vm233, %v566, %v568
  %v575 = vsel %vm233, %v568, %v570
  %v576 = vsel %vm233, %v570, %v572
  %581 = vrot.lane.b32.xlu0 %v445, 94
  %v582 = vpop.permute.xlu0 %581
  %583 = vrot.lane.b32.xlu0 %v446, 94
  %v584 = vpop.permute.xlu0 %583
  %585 = vrot.lane.b32.xlu0 %v447, 94
  %v586 = vpop.permute.xlu0 %585
  %587 = vrot.lane.b32.xlu0 %v448, 94
  %v588 = vpop.permute.xlu0 %587
  %589 = vrot.lane.b32.xlu0 %v449, 94
  %v590 = vpop.permute.xlu0 %589
  %v591 = vsel %vm256, %v582, %v584
  %v592 = vsel %vm256, %v584, %v586
  %v593 = vsel %vm256, %v586, %v588
  %v594 = vsel %vm256, %v588, %v590
  %v599 = vld [vmem:[%s3] sm:$0xff]
  %v600 = vld [vmem:[%s4] sm:$0xff]
  %602 = vset.pattern.permute.xlu0 0
  %603 = vperm.xlu0 %602, %v600
  %v604 = vpop.permute.xlu0 %603
  %v607 = vunpack.c.l.b16 %v599
  %v608 = vunpack.c.h.b16 %v599
  %v609 = vpack.c.b16 %v607, %v607
  %v610 = vpack.c.b16 %v608, %v608
  %v613 = vsel %vm290, %v610, 0
  %615 = vmatprep.subr.bf16.mxu0 %v442
  %616 = vmatpush1.bf16.msra.mxu0 %v441
  %617 = vmatprep.subr.bf16.mxu0 %v466
  %618 = vmatpush1.bf16.msra.mxu0 %v465
  %619 = vmatprep.subr.bf16.mxu0 %v484
  %620 = vmatpush1.bf16.msra.mxu0 %v483
  %621 = vmatprep.subr.bf16.mxu0 %v502
  %622 = vmatpush1.bf16.msra.mxu0 %v501
  %623 = vmatprep.subr.bf16.mxu0 %v520
  %624 = vmatpush1.bf16.msra.mxu0 %v519
  %625 = vmatprep.subr.bf16.mxu0 %v538
  %626 = vmatpush1.bf16.msra.mxu0 %v537
  %627 = vmatprep.subr.bf16.mxu0 %v556
  %628 = vmatpush1.bf16.msra.mxu0 %v555
  %629 = vmatprep.subr.bf16.mxu0 %v574
  %630 = vmatpush1.bf16.msra.mxu0 %v573
  %631 = vmatprep.subr.bf16.mxu0 %v592
  %632 = vmatpush1.bf16.msra.mxu0 %v591
  %633 = vmatprep.subr.bf16.mxu0 0
  %634 = vmatpush1.bf16.msra.mxu0 0
  %635 = vmatprep.subr.bf16.mxu0 0
  %636 = vmatpush1.bf16.msra.mxu0 0
  %637 = vmatprep.subr.bf16.mxu0 0
  %638 = vmatpush1.bf16.msra.mxu0 0
  %639 = vmatprep.subr.bf16.mxu0 0
  %640 = vmatpush1.bf16.msra.mxu0 0
  %641 = vmatprep.subr.bf16.mxu0 0
  %642 = vmatpush1.bf16.msra.mxu0 0
  %643 = vmatprep.subr.bf16.mxu0 0
  %644 = vmatpush1.bf16.msra.mxu0 0
  %645 = vmatprep.subr.bf16.mxu0 0
  %646 = vmatpush1.bf16.msra.mxu0 0
  %647 = vmatprep.mubr.bf16.mxu0 %v613
  %648 = vmatmul.mubr.bf16.gmra.mrb[0].mxu0 %v609
  %v649 = vpop.f32.mrb[0].mxu0
  %v650 = vadd.f32 %v604, %v649
  %v651 = vpop.f32.mrb[0].mxu0
  %v652 = vadd.f32 %v604, %v651
  %v653 = vpop.f32.mrb[0].mxu0
  %v654 = vpop.f32.mrb[0].mxu0
  %655 = vdwg.mxu0
  %656 = vmatprep.subr.bf16.mxu0 %v444
  %657 = vmatpush1.bf16.msra.mxu0 %v443
  %658 = vmatprep.subr.bf16.mxu0 %v468
  %659 = vmatpush1.bf16.msra.mxu0 %v467
  %660 = vmatprep.subr.bf16.mxu0 %v486
  %661 = vmatpush1.bf16.msra.mxu0 %v485
  %662 = vmatprep.subr.bf16.mxu0 %v504
  %663 = vmatpush1.bf16.msra.mxu0 %v503
  %664 = vmatprep.subr.bf16.mxu0 %v522
  %665 = vmatpush1.bf16.msra.mxu0 %v521
  %666 = vmatprep.subr.bf16.mxu0 %v540
  %667 = vmatpush1.bf16.msra.mxu0 %v539
  %668 = vmatprep.subr.bf16.mxu0 %v558
  %669 = vmatpush1.bf16.msra.mxu0 %v557
  %670 = vmatprep.subr.bf16.mxu0 %v576
  %671 = vmatpush1.bf16.msra.mxu0 %v575
  %672 = vmatprep.subr.bf16.mxu0 %v594
  %673 = vmatpush1.bf16.msra.mxu0 %v593
  %674 = vmatprep.subr.bf16.mxu0 0
  %675 = vmatpush1.bf16.msra.mxu0 0
  %676 = vmatprep.subr.bf16.mxu0 0
  %677 = vmatpush1.bf16.msra.mxu0 0
  %678 = vmatprep.subr.bf16.mxu0 0
  %679 = vmatpush1.bf16.msra.mxu0 0
  %680 = vmatprep.subr.bf16.mxu0 0
  %681 = vmatpush1.bf16.msra.mxu0 0
  %682 = vmatprep.subr.bf16.mxu0 0
  %683 = vmatpush1.bf16.msra.mxu0 0
  %684 = vmatprep.subr.bf16.mxu0 0
  %685 = vmatpush1.bf16.msra.mxu0 0
  %686 = vmatprep.subr.bf16.mxu0 0
  %687 = vmatpush1.bf16.msra.mxu0 0
  %688 = vmatprep.mubr.bf16.mxu0 %v613
  %689 = vmatmul.mubr.bf16.gmra.mrb[0].mxu0 %v609
  %v690 = vpop.f32.mrb[0].mxu0
  %v691 = vadd.f32 %v604, %v690
  %v692 = vpop.f32.mrb[0].mxu0
  %v693 = vadd.f32 %v604, %v692
  %v694 = vpop.f32.mrb[0].mxu0
  %v695 = vpop.f32.mrb[0].mxu0
  %696 = vdwg.mxu0
  %v697 = vmax.f32 %v650, 0.0
  %v698 = vmax.f32 %v652, 0.0
  %v699 = vmax.f32 %v691, 0.0
  %v700 = vmax.f32 %v693, 0.0
  %701 = vst [vmem:[%s5] sm:$0xff] %v697
  %702 = vst [vmem:[%s5 + $0x8] sm:$0xff] %v698
  %703 = vst [vmem:[%s5 + $0x10] sm:$0xff] %v699
  %704 = vst [vmem:[%s5 + $0x18] sm:$0xff] %v700
  // Predicated region
  $region22: #{down_step.1} parent=0 // pred_check
    _
  $region23: #{down_step.1} parent=0 // pred_check_branch
    %706 = sbr.rel (0) target = $region25
  $region24: #{down_step.1} parent=0 // pred_region
    _
  $region25: #{down_step.1} parent=0 // pred_fallthru
    _
  // Predicated region
  $region26: #{down_step.1} parent=0 // pred_check
    _
  $region27: #{down_step.1} parent=0 // pred_check_branch
    %708 = sbr.rel (0) target = $region29
  $region28: #{down_step.1} parent=0 // pred_region
    _
  $region29: #{down_step.1} parent=0 // pred_fallthru
    _

</llo_original>
